<compile_context>
chip_gen: v7x
topology: tpu7x:2x2x1
jax: 0.10.0
libtpu: 0.0.40
codegen_flags: <defaults>
</compile_context>

<pallas_src>
import functools

import jax
import jax.numpy as jnp
from jax.experimental import pallas as pl
from jax.experimental.pallas import tpu as pltpu


def _gml_loss_kernel(lbl_ref, p_hbm, nc_ref, out_ref, s_ref, sem,
                     *, t, b, n_v, n_o, window):
    """Single grid step.

    Phase 1: gather the label-selected rows p_o_on_v[i, label[i], :] from HBM
             into the (b, n_o_pad) VMEM scratch with a `window`-deep chain of
             async DMAs (native dtype, no per-row compute).
    Phase 2: one vectorized pass: stable batch-axis softmax of t*p, p_ba, loss.
    """

    def _copy(i):
        # Flat row index into the (b * n_v, n_o_pad) HBM view.
        flat = i * n_v + lbl_ref[i]
        return pltpu.make_async_copy(
            p_hbm.at[pl.ds(flat, 1), :],       # (1, n_o_pad) HBM source row
            s_ref.at[pl.ds(i, 1), :],          # (1, n_o_pad) VMEM destination row
            sem.at[i % window])

    # ---- Phase 1: prime the window (static unroll), then stream the rest. ----
    for j in range(min(window, b)):            # static Python loop, window <= 8
        _copy(j).start()

    @pl.loop(0, b)
    def _(i):
        _copy(i).wait()                        # row i resident in VMEM

        @pl.when(i + window < b)
        def _():
            _copy(i + window).start()          # keep the DMA window full

    # ---- Phase 2: single pass over the gathered (b, n_o_pad) slab. ----------
    p = s_ref[...].astype(jnp.float32)                       # (b, n_o_pad)
    nc = nc_ref[...].astype(jnp.float32)                     # (1, n_o_pad), padded lanes 0

    # p_phi = softmax over the batch axis of t*p_o.
    # (The reference's num_c * exp(...) factor cancels in the ratio; the
    #  max-subtraction keeps exp finite for t = 100 and honest inputs.)
    col_max = jnp.max(p, axis=0, keepdims=True)               # (1, n_o_pad)
    e = jnp.exp(t * (p - col_max))                            # (b, n_o_pad)
    denom = jnp.sum(e, axis=0, keepdims=True)                 # (1, n_o_pad)
    p_phi = e * pl.reciprocal(denom, approx=True)

    # p_ba = sum_b(p_phi * n_c) / (num_c + 1e-6)
    # (n_c of shape (b,) broadcasts along the LAST dim in the reference,
    #  hence the (1, n_o_pad) row; requires b == n_o.)
    num_c = jnp.sum(nc, keepdims=True)                        # (1, 1)
    inv_numc = pl.reciprocal(num_c + 1e-6, approx=True)
    p_ba = jnp.sum(p_phi * nc, axis=0, keepdims=True) * inv_numc  # (1, n_o_pad)

    # p_ba[p_ba < 1e-8] = 1.0  (padded lanes have nc == 0 so they land here ->
    # log contribution 0; the loss scale below uses the TRUE n_o).
    p_ba = jnp.where(p_ba < 1e-8, jnp.ones_like(p_ba), p_ba)

    loss = (-1.0 / n_o) * jnp.sum(jnp.log(p_ba), keepdims=True)   # (1, 1)
    out_ref[...] = loss.astype(out_ref.dtype)


def gml_loss(p_o_on_v, v_label, n_c, t=100.0):
    """Pallas implementation of Gml_loss.forward. Returns a scalar."""
    b, n_v, n_o = p_o_on_v.shape
    assert b == n_o, "reference broadcasting (p_phi * n_c) requires b == n_o"

    n_o_pad = ((n_o + 127) // 128) * 128       # lane-dense last dim
    window = min(8, b)                         # in-flight DMA window

    # Wrapper-side layout plumbing (cheap XLA ops):
    #  * pad n_o lanes: p with finite zeros, nc lanes with 0 (see clamp path)
    #  * flatten p to (b*n_v, n_o_pad) so the gather is a single flat row index
    #  * labels -> 1-D int32 scalar-prefetch operand (lands in SMEM)
    #  * only column 0 of n_c is used -> ship a (1, n_o_pad) f32 row
    p_pad = p_o_on_v
    if n_o_pad != n_o:
        p_pad = jnp.pad(p_o_on_v, ((0, 0), (0, 0), (0, n_o_pad - n_o)))
    p_flat = p_pad.reshape(b * n_v, n_o_pad)   # contiguous reshape, free

    lbl = v_label.astype(jnp.int32).reshape(b)
    nc_row = n_c[:, 0].astype(jnp.float32).reshape(1, b)
    if n_o_pad != n_o:                         # b == n_o
        nc_row = jnp.pad(nc_row, ((0, 0), (0, n_o_pad - n_o)))

    # Need-based VMEM budget: native-dtype scratch + f32 intermediates + slack.
    scratch_bytes = b * n_o_pad * p_o_on_v.dtype.itemsize
    f32_bytes = b * n_o_pad * 4
    vmem_limit = int(min(96 * 1024 * 1024,
                         max(32 * 1024 * 1024,
                             scratch_bytes + 2 * f32_bytes + (4 << 20))))

    out = pl.pallas_call(
        functools.partial(_gml_loss_kernel, t=float(t), b=b, n_v=n_v,
                          n_o=n_o, window=window),
        out_shape=jax.ShapeDtypeStruct((1, 1), jnp.float32),
        grid_spec=pltpu.PrefetchScalarGridSpec(
            num_scalar_prefetch=1,             # v_label -> SMEM
            grid=(1,),                         # single step: no per-row overhead
            in_specs=[
                pl.BlockSpec(memory_space=pl.ANY),                   # p stays in HBM
                pl.BlockSpec((1, n_o_pad), lambda i, _lbl: (0, 0)),  # nc row, one DMA
            ],
            out_specs=pl.BlockSpec((1, 1), lambda i, _lbl: (0, 0)),
            scratch_shapes=[
                pltpu.VMEM((b, n_o_pad), p_o_on_v.dtype),  # gathered rows (native dtype)
                pltpu.SemaphoreType.DMA((window,)),        # DMA window semaphores
            ]),
        compiler_params=pltpu.CompilerParams(
            dimension_semantics=("arbitrary",),
            vmem_limit_bytes=vmem_limit),
    )(lbl, p_flat, nc_row)
    return out[0, 0]


# ----------------------------- pure-JAX references -----------------------------
def gml_loss_ref(p_o_on_v, v_label, n_c, t=100.0):
    """Line-by-line mirror of the PyTorch code (numerically naive)."""
    nc0 = n_c[:, 0]
    b = p_o_on_v.shape[0]
    n_o = p_o_on_v.shape[-1]
    p_o = p_o_on_v[jnp.arange(b), v_label, :]
    num_c = jnp.sum(nc0).reshape(1, -1)
    p_o_exp = jnp.exp(p_o * t)
    wed = num_c * p_o_exp
    p_phi = wed / jnp.sum(wed, axis=0, keepdims=True)
    p_ba = jnp.sum(p_phi * nc0, axis=0, keepdims=True) / (num_c + 1e-6)
    p_ba = jnp.where(p_ba < 1e-8, 1.0, p_ba)
    return (-1.0 / n_o) * jnp.sum(jnp.log(p_ba))


def gml_loss_ref_stable(p_o_on_v, v_label, n_c, t=100.0):
    """Same math with a stable batch-axis softmax (num_c cancels in p_phi)."""
    nc0 = n_c[:, 0]
    b = p_o_on_v.shape[0]
    n_o = p_o_on_v.shape[-1]
    p_o = p_o_on_v[jnp.arange(b), v_label, :]
    num_c = jnp.sum(nc0)
    p_phi = jax.nn.softmax(p_o * t, axis=0)
    p_ba = jnp.sum(p_phi * nc0, axis=0, keepdims=True) / (num_c + 1e-6)
    p_ba = jnp.where(p_ba < 1e-8, 1.0, p_ba)
    return (-1.0 / n_o) * jnp.sum(jnp.log(p_ba))


if __name__ == "__main__":
    # Small shapes consistent with the forward (b == n_o, see note above).
    # b > window exercises the DMA-window refill path; n_o = 16 exercises the
    # lane-padding path (16 -> 128).
    b, n_v, n_o = 16, 4, 16
    key = jax.random.PRNGKey(0)
    k1, k2, k3, k4 = jax.random.split(key, 4)

    v_label = jax.random.randint(k2, (b,), 0, n_v, jnp.int32)
    n_c = jax.random.uniform(k3, (b, n_o), jnp.float32) * 9.0 + 1.0

    # Tolerances cover the EUP approx-reciprocal (pl.reciprocal(approx=True)).
    RTOL, ATOL = 5e-3, 1e-4

    # Case 1: inputs scaled so the naive reference stays finite at t=100 ->
    # compare kernel against the PyTorch-faithful reference.
    p_small = jax.random.uniform(k1, (b, n_v, n_o), jnp.float32) * 0.3
    loss = jax.block_until_ready(gml_loss(p_small, v_label, n_c, t=100.0))
    ref = jax.block_until_ready(gml_loss_ref(p_small, v_label, n_c, t=100.0))
    assert jnp.isfinite(loss), f"non-finite loss: {loss}"
    assert jnp.allclose(loss, ref, rtol=RTOL, atol=ATOL), (loss, ref)

    # Case 2: full-range probabilities.  exp(t*p_o) overflows f32 in the naive
    # form; the kernel's stable softmax must stay finite and match the stable
    # reference.
    p_full = jax.random.uniform(k4, (b, n_v, n_o), jnp.float32)
    loss2 = jax.block_until_ready(gml_loss(p_full, v_label, n_c, t=100.0))
    ref2 = jax.block_until_ready(gml_loss_ref_stable(p_full, v_label, n_c, t=100.0))
    assert jnp.isfinite(loss2), f"non-finite loss: {loss2}"
    assert jnp.allclose(loss2, ref2, rtol=RTOL, atol=ATOL), (loss2, ref2)

    print("KERNEL_OK")
</pallas_src>

<mosaic_0001>
module attributes {stable_mosaic.version = 11 : i64} {
  func.func @_gml_loss_kernel(%arg0: i32, %arg1: memref<16xi32, #tpu.memory_space<smem>>, %arg2: memref<64x128xf32, #tpu.memory_space<any>>, %arg3: memref<1x128xf32, #tpu.memory_space<vmem>>, %arg4: memref<1x1xf32, #tpu.memory_space<vmem>>, %arg5: memref<16x128xf32, #tpu.memory_space<vmem>>, %arg6: memref<8x!tpu.dma_semaphore, #tpu.memory_space<semaphore_mem>>) attributes {dimension_semantics = [#tpu.dimension_semantics<arbitrary>], iteration_bounds = array<i64: 1>, scalar_prefetch = 1 : i64, scratch_operands = 2 : i64, tpu.core_type = #tpu.core_type<tc>, window_params = [{}, {pipeline_mode = #tpu.pipeline_mode<synchronous>, transform_indices = @transform_1, window_bounds = array<i64: 1, 128>}, {pipeline_mode = #tpu.pipeline_mode<synchronous>, transform_indices = @transform_2, window_bounds = array<i64: 1, 1>}]} {
    %c0 = arith.constant 0 : index
    %0 = memref.load %arg1[%c0] : memref<16xi32, #tpu.memory_space<smem>>
    %c0_i32 = arith.constant 0 : i32
    %1 = arith.addi %c0_i32, %0 : i32
    %c0_i32_0 = arith.constant 0 : i32
    %c0_i32_1 = arith.constant 0 : i32
    %2 = tpu.memref_slice %arg2[%1, %c0_i32_1] : memref<64x128xf32, #tpu.memory_space<any>> -> memref<1x128xf32, #tpu.memory_space<any>>
    %c0_i32_2 = arith.constant 0 : i32
    %c0_i32_3 = arith.constant 0 : i32
    %3 = tpu.memref_slice %arg5[%c0_i32_2, %c0_i32_3] : memref<16x128xf32, #tpu.memory_space<vmem>> -> memref<1x128xf32, #tpu.memory_space<vmem>>
    %4 = tpu.memref_slice %arg6[%c0_i32_0] : memref<8x!tpu.dma_semaphore, #tpu.memory_space<semaphore_mem>> -> memref<1x!tpu.dma_semaphore, #tpu.memory_space<semaphore_mem>>
    %5 = tpu.memref_squeeze %4 : memref<1x!tpu.dma_semaphore, #tpu.memory_space<semaphore_mem>> -> memref<!tpu.dma_semaphore, #tpu.memory_space<semaphore_mem>>
    tpu.enqueue_dma source(%2 : memref<1x128xf32, #tpu.memory_space<any>>) target(%3 : memref<1x128xf32, #tpu.memory_space<vmem>>) target_semaphore(%5 : memref<!tpu.dma_semaphore, #tpu.memory_space<semaphore_mem>>)
    %c1 = arith.constant 1 : index
    %6 = memref.load %arg1[%c1] : memref<16xi32, #tpu.memory_space<smem>>
    %c4_i32 = arith.constant 4 : i32
    %7 = arith.addi %c4_i32, %6 : i32
    %c1_i32 = arith.constant 1 : i32
    %c0_i32_4 = arith.constant 0 : i32
    %8 = tpu.memref_slice %arg2[%7, %c0_i32_4] : memref<64x128xf32, #tpu.memory_space<any>> -> memref<1x128xf32, #tpu.memory_space<any>>
    %c1_i32_5 = arith.constant 1 : i32
    %c0_i32_6 = arith.constant 0 : i32
    %9 = tpu.memref_slice %arg5[%c1_i32_5, %c0_i32_6] : memref<16x128xf32, #tpu.memory_space<vmem>> -> memref<1x128xf32, #tpu.memory_space<vmem>>
    %10 = tpu.memref_slice %arg6[%c1_i32] : memref<8x!tpu.dma_semaphore, #tpu.memory_space<semaphore_mem>> -> memref<1x!tpu.dma_semaphore, #tpu.memory_space<semaphore_mem>>
    %11 = tpu.memref_squeeze %10 : memref<1x!tpu.dma_semaphore, #tpu.memory_space<semaphore_mem>> -> memref<!tpu.dma_semaphore, #tpu.memory_space<semaphore_mem>>
    tpu.enqueue_dma source(%8 : memref<1x128xf32, #tpu.memory_space<any>>) target(%9 : memref<1x128xf32, #tpu.memory_space<vmem>>) target_semaphore(%11 : memref<!tpu.dma_semaphore, #tpu.memory_space<semaphore_mem>>)
    %c2 = arith.constant 2 : index
    %12 = memref.load %arg1[%c2] : memref<16xi32, #tpu.memory_space<smem>>
    %c8_i32 = arith.constant 8 : i32
    %13 = arith.addi %c8_i32, %12 : i32
    %c2_i32 = arith.constant 2 : i32
    %c0_i32_7 = arith.constant 0 : i32
    %14 = tpu.memref_slice %arg2[%13, %c0_i32_7] : memref<64x128xf32, #tpu.memory_space<any>> -> memref<1x128xf32, #tpu.memory_space<any>>
    %c2_i32_8 = arith.constant 2 : i32
    %c0_i32_9 = arith.constant 0 : i32
    %15 = tpu.memref_slice %arg5[%c2_i32_8, %c0_i32_9] : memref<16x128xf32, #tpu.memory_space<vmem>> -> memref<1x128xf32, #tpu.memory_space<vmem>>
    %16 = tpu.memref_slice %arg6[%c2_i32] : memref<8x!tpu.dma_semaphore, #tpu.memory_space<semaphore_mem>> -> memref<1x!tpu.dma_semaphore, #tpu.memory_space<semaphore_mem>>
    %17 = tpu.memref_squeeze %16 : memref<1x!tpu.dma_semaphore, #tpu.memory_space<semaphore_mem>> -> memref<!tpu.dma_semaphore, #tpu.memory_space<semaphore_mem>>
    tpu.enqueue_dma source(%14 : memref<1x128xf32, #tpu.memory_space<any>>) target(%15 : memref<1x128xf32, #tpu.memory_space<vmem>>) target_semaphore(%17 : memref<!tpu.dma_semaphore, #tpu.memory_space<semaphore_mem>>)
    %c3 = arith.constant 3 : index
    %18 = memref.load %arg1[%c3] : memref<16xi32, #tpu.memory_space<smem>>
    %c12_i32 = arith.constant 12 : i32
    %19 = arith.addi %c12_i32, %18 : i32
    %c3_i32 = arith.constant 3 : i32
    %c0_i32_10 = arith.constant 0 : i32
    %20 = tpu.memref_slice %arg2[%19, %c0_i32_10] : memref<64x128xf32, #tpu.memory_space<any>> -> memref<1x128xf32, #tpu.memory_space<any>>
    %c3_i32_11 = arith.constant 3 : i32
    %c0_i32_12 = arith.constant 0 : i32
    %21 = tpu.memref_slice %arg5[%c3_i32_11, %c0_i32_12] : memref<16x128xf32, #tpu.memory_space<vmem>> -> memref<1x128xf32, #tpu.memory_space<vmem>>
    %22 = tpu.memref_slice %arg6[%c3_i32] : memref<8x!tpu.dma_semaphore, #tpu.memory_space<semaphore_mem>> -> memref<1x!tpu.dma_semaphore, #tpu.memory_space<semaphore_mem>>
    %23 = tpu.memref_squeeze %22 : memref<1x!tpu.dma_semaphore, #tpu.memory_space<semaphore_mem>> -> memref<!tpu.dma_semaphore, #tpu.memory_space<semaphore_mem>>
    tpu.enqueue_dma source(%20 : memref<1x128xf32, #tpu.memory_space<any>>) target(%21 : memref<1x128xf32, #tpu.memory_space<vmem>>) target_semaphore(%23 : memref<!tpu.dma_semaphore, #tpu.memory_space<semaphore_mem>>)
    %c4 = arith.constant 4 : index
    %24 = memref.load %arg1[%c4] : memref<16xi32, #tpu.memory_space<smem>>
    %c16_i32 = arith.constant 16 : i32
    %25 = arith.addi %c16_i32, %24 : i32
    %c4_i32_13 = arith.constant 4 : i32
    %c0_i32_14 = arith.constant 0 : i32
    %26 = tpu.memref_slice %arg2[%25, %c0_i32_14] : memref<64x128xf32, #tpu.memory_space<any>> -> memref<1x128xf32, #tpu.memory_space<any>>
    %c4_i32_15 = arith.constant 4 : i32
    %c0_i32_16 = arith.constant 0 : i32
    %27 = tpu.memref_slice %arg5[%c4_i32_15, %c0_i32_16] : memref<16x128xf32, #tpu.memory_space<vmem>> -> memref<1x128xf32, #tpu.memory_space<vmem>>
    %28 = tpu.memref_slice %arg6[%c4_i32_13] : memref<8x!tpu.dma_semaphore, #tpu.memory_space<semaphore_mem>> -> memref<1x!tpu.dma_semaphore, #tpu.memory_space<semaphore_mem>>
    %29 = tpu.memref_squeeze %28 : memref<1x!tpu.dma_semaphore, #tpu.memory_space<semaphore_mem>> -> memref<!tpu.dma_semaphore, #tpu.memory_space<semaphore_mem>>
    tpu.enqueue_dma source(%26 : memref<1x128xf32, #tpu.memory_space<any>>) target(%27 : memref<1x128xf32, #tpu.memory_space<vmem>>) target_semaphore(%29 : memref<!tpu.dma_semaphore, #tpu.memory_space<semaphore_mem>>)
    %c5 = arith.constant 5 : index
    %30 = memref.load %arg1[%c5] : memref<16xi32, #tpu.memory_space<smem>>
    %c20_i32 = arith.constant 20 : i32
    %31 = arith.addi %c20_i32, %30 : i32
    %c5_i32 = arith.constant 5 : i32
    %c0_i32_17 = arith.constant 0 : i32
    %32 = tpu.memref_slice %arg2[%31, %c0_i32_17] : memref<64x128xf32, #tpu.memory_space<any>> -> memref<1x128xf32, #tpu.memory_space<any>>
    %c5_i32_18 = arith.constant 5 : i32
    %c0_i32_19 = arith.constant 0 : i32
    %33 = tpu.memref_slice %arg5[%c5_i32_18, %c0_i32_19] : memref<16x128xf32, #tpu.memory_space<vmem>> -> memref<1x128xf32, #tpu.memory_space<vmem>>
    %34 = tpu.memref_slice %arg6[%c5_i32] : memref<8x!tpu.dma_semaphore, #tpu.memory_space<semaphore_mem>> -> memref<1x!tpu.dma_semaphore, #tpu.memory_space<semaphore_mem>>
    %35 = tpu.memref_squeeze %34 : memref<1x!tpu.dma_semaphore, #tpu.memory_space<semaphore_mem>> -> memref<!tpu.dma_semaphore, #tpu.memory_space<semaphore_mem>>
    tpu.enqueue_dma source(%32 : memref<1x128xf32, #tpu.memory_space<any>>) target(%33 : memref<1x128xf32, #tpu.memory_space<vmem>>) target_semaphore(%35 : memref<!tpu.dma_semaphore, #tpu.memory_space<semaphore_mem>>)
    %c6 = arith.constant 6 : index
    %36 = memref.load %arg1[%c6] : memref<16xi32, #tpu.memory_space<smem>>
    %c24_i32 = arith.constant 24 : i32
    %37 = arith.addi %c24_i32, %36 : i32
    %c6_i32 = arith.constant 6 : i32
    %c0_i32_20 = arith.constant 0 : i32
    %38 = tpu.memref_slice %arg2[%37, %c0_i32_20] : memref<64x128xf32, #tpu.memory_space<any>> -> memref<1x128xf32, #tpu.memory_space<any>>
    %c6_i32_21 = arith.constant 6 : i32
    %c0_i32_22 = arith.constant 0 : i32
    %39 = tpu.memref_slice %arg5[%c6_i32_21, %c0_i32_22] : memref<16x128xf32, #tpu.memory_space<vmem>> -> memref<1x128xf32, #tpu.memory_space<vmem>>
    %40 = tpu.memref_slice %arg6[%c6_i32] : memref<8x!tpu.dma_semaphore, #tpu.memory_space<semaphore_mem>> -> memref<1x!tpu.dma_semaphore, #tpu.memory_space<semaphore_mem>>
    %41 = tpu.memref_squeeze %40 : memref<1x!tpu.dma_semaphore, #tpu.memory_space<semaphore_mem>> -> memref<!tpu.dma_semaphore, #tpu.memory_space<semaphore_mem>>
    tpu.enqueue_dma source(%38 : memref<1x128xf32, #tpu.memory_space<any>>) target(%39 : memref<1x128xf32, #tpu.memory_space<vmem>>) target_semaphore(%41 : memref<!tpu.dma_semaphore, #tpu.memory_space<semaphore_mem>>)
    %c7 = arith.constant 7 : index
    %42 = memref.load %arg1[%c7] : memref<16xi32, #tpu.memory_space<smem>>
    %c28_i32 = arith.constant 28 : i32
    %43 = arith.addi %c28_i32, %42 : i32
    %c7_i32 = arith.constant 7 : i32
    %c0_i32_23 = arith.constant 0 : i32
    %44 = tpu.memref_slice %arg2[%43, %c0_i32_23] : memref<64x128xf32, #tpu.memory_space<any>> -> memref<1x128xf32, #tpu.memory_space<any>>
    %c7_i32_24 = arith.constant 7 : i32
    %c0_i32_25 = arith.constant 0 : i32
    %45 = tpu.memref_slice %arg5[%c7_i32_24, %c0_i32_25] : memref<16x128xf32, #tpu.memory_space<vmem>> -> memref<1x128xf32, #tpu.memory_space<vmem>>
    %46 = tpu.memref_slice %arg6[%c7_i32] : memref<8x!tpu.dma_semaphore, #tpu.memory_space<semaphore_mem>> -> memref<1x!tpu.dma_semaphore, #tpu.memory_space<semaphore_mem>>
    %47 = tpu.memref_squeeze %46 : memref<1x!tpu.dma_semaphore, #tpu.memory_space<semaphore_mem>> -> memref<!tpu.dma_semaphore, #tpu.memory_space<semaphore_mem>>
    tpu.enqueue_dma source(%44 : memref<1x128xf32, #tpu.memory_space<any>>) target(%45 : memref<1x128xf32, #tpu.memory_space<vmem>>) target_semaphore(%47 : memref<!tpu.dma_semaphore, #tpu.memory_space<semaphore_mem>>)
    %c0_i32_26 = arith.constant 0 : i32
    %c16_i32_27 = arith.constant 16 : i32
    %48 = arith.addi %c0_i32_26, %c16_i32_27 : i32
    %c1_i32_28 = arith.constant 1 : i32
    scf.for %arg7 = %c0_i32_26 to %48 step %c1_i32_28  : i32 {
      %c1_i32_45 = arith.constant 1 : i32
      %90 = arith.muli %arg7, %c1_i32_45 : i32
      %c0_i32_46 = arith.constant 0 : i32
      %91 = arith.addi %c0_i32_46, %90 : i32
      %c4_i32_47 = arith.constant 4 : i32
      %92 = arith.muli %91, %c4_i32_47 : i32
      %93 = arith.index_cast %91 : i32 to index
      %94 = memref.load %arg1[%93] : memref<16xi32, #tpu.memory_space<smem>>
      %95 = arith.addi %92, %94 : i32
      %c8_i32_48 = arith.constant 8 : i32
      %c0_i32_49 = arith.constant 0 : i32
      %96 = arith.cmpi eq, %c8_i32_48, %c0_i32_49 : i32
      %c1_i32_50 = arith.constant 1 : i32
      %97 = arith.select %96, %c1_i32_50, %c8_i32_48 : i32
      %98 = arith.remsi %91, %97 : i32
      %c0_i32_51 = arith.constant 0 : i32
      %99 = arith.cmpi ne, %98, %c0_i32_51 : i32
      %c0_i32_52 = arith.constant 0 : i32
      %100 = arith.cmpi slt, %98, %c0_i32_52 : i32
      %c0_i32_53 = arith.constant 0 : i32
      %101 = arith.cmpi slt, %97, %c0_i32_53 : i32
      %102 = arith.xori %100, %101 : i1
      %103 = arith.andi %102, %99 : i1
      %104 = arith.addi %98, %97 : i32
      %105 = arith.select %103, %104, %98 : i32
      %c0_i32_54 = arith.constant 0 : i32
      %106 = tpu.memref_slice %arg2[%95, %c0_i32_54] : memref<64x128xf32, #tpu.memory_space<any>> -> memref<1x128xf32, #tpu.memory_space<any>>
      %c0_i32_55 = arith.constant 0 : i32
      %107 = tpu.memref_slice %arg5[%91, %c0_i32_55] : memref<16x128xf32, #tpu.memory_space<vmem>> -> memref<1x128xf32, #tpu.memory_space<vmem>>
      %108 = tpu.memref_slice %arg6[%105] : memref<8x!tpu.dma_semaphore, #tpu.memory_space<semaphore_mem>> -> memref<1x!tpu.dma_semaphore, #tpu.memory_space<semaphore_mem>>
      %109 = tpu.memref_squeeze %108 : memref<1x!tpu.dma_semaphore, #tpu.memory_space<semaphore_mem>> -> memref<!tpu.dma_semaphore, #tpu.memory_space<semaphore_mem>>
      tpu.wait_dma2 semaphore(%109 : memref<!tpu.dma_semaphore, #tpu.memory_space<semaphore_mem>>) src(%106 : memref<1x128xf32, #tpu.memory_space<any>>) dst(%107 : memref<1x128xf32, #tpu.memory_space<vmem>>)
      %c8_i32_56 = arith.constant 8 : i32
      %110 = arith.addi %91, %c8_i32_56 : i32
      %c16_i32_57 = arith.constant 16 : i32
      %111 = arith.cmpi slt, %110, %c16_i32_57 : i32
      %112 = arith.extui %111 : i1 to i32
      %c0_i32_58 = arith.constant 0 : i32
      %113 = arith.cmpi ne, %112, %c0_i32_58 : i32
      scf.if %113 {
        %c8_i32_59 = arith.constant 8 : i32
        %114 = arith.addi %91, %c8_i32_59 : i32
        %c4_i32_60 = arith.constant 4 : i32
        %115 = arith.muli %114, %c4_i32_60 : i32
        %116 = arith.index_cast %114 : i32 to index
        %117 = memref.load %arg1[%116] : memref<16xi32, #tpu.memory_space<smem>>
        %118 = arith.addi %115, %117 : i32
        %c8_i32_61 = arith.constant 8 : i32
        %c0_i32_62 = arith.constant 0 : i32
        %119 = arith.cmpi eq, %c8_i32_61, %c0_i32_62 : i32
        %c1_i32_63 = arith.constant 1 : i32
        %120 = arith.select %119, %c1_i32_63, %c8_i32_61 : i32
        %121 = arith.remsi %114, %120 : i32
        %c0_i32_64 = arith.constant 0 : i32
        %122 = arith.cmpi ne, %121, %c0_i32_64 : i32
        %c0_i32_65 = arith.constant 0 : i32
        %123 = arith.cmpi slt, %121, %c0_i32_65 : i32
        %c0_i32_66 = arith.constant 0 : i32
        %124 = arith.cmpi slt, %120, %c0_i32_66 : i32
        %125 = arith.xori %123, %124 : i1
        %126 = arith.andi %125, %122 : i1
        %127 = arith.addi %121, %120 : i32
        %128 = arith.select %126, %127, %121 : i32
        %c0_i32_67 = arith.constant 0 : i32
        %129 = tpu.memref_slice %arg2[%118, %c0_i32_67] : memref<64x128xf32, #tpu.memory_space<any>> -> memref<1x128xf32, #tpu.memory_space<any>>
        %c0_i32_68 = arith.constant 0 : i32
        %130 = tpu.memref_slice %arg5[%114, %c0_i32_68] : memref<16x128xf32, #tpu.memory_space<vmem>> -> memref<1x128xf32, #tpu.memory_space<vmem>>
        %131 = tpu.memref_slice %arg6[%128] : memref<8x!tpu.dma_semaphore, #tpu.memory_space<semaphore_mem>> -> memref<1x!tpu.dma_semaphore, #tpu.memory_space<semaphore_mem>>
        %132 = tpu.memref_squeeze %131 : memref<1x!tpu.dma_semaphore, #tpu.memory_space<semaphore_mem>> -> memref<!tpu.dma_semaphore, #tpu.memory_space<semaphore_mem>>
        tpu.enqueue_dma source(%129 : memref<1x128xf32, #tpu.memory_space<any>>) target(%130 : memref<1x128xf32, #tpu.memory_space<vmem>>) target_semaphore(%132 : memref<!tpu.dma_semaphore, #tpu.memory_space<semaphore_mem>>)
      } else {
      }
    }
    %c16_i32_29 = arith.constant 16 : i32
    %c0_30 = arith.constant 0 : index
    %c0_31 = arith.constant 0 : index
    %49 = vector.load %arg5[%c0_30, %c0_31] : memref<16x128xf32, #tpu.memory_space<vmem>>, vector<16x128xf32>
    %c0_32 = arith.constant 0 : index
    %c0_33 = arith.constant 0 : index
    %50 = vector.load %arg3[%c0_32, %c0_33] : memref<1x128xf32, #tpu.memory_space<vmem>>, vector<1x128xf32>
    %cst = arith.constant dense<0xFF800000> : vector<128xf32>
    %51 = vector.multi_reduction <maximumf>, %49, %cst [0] : vector<16x128xf32> to vector<128xf32>
    %52 = vector.shape_cast %51 : vector<128xf32> to vector<1x128xf32>
    %53 = vector.broadcast %52 : vector<1x128xf32> to vector<16x128xf32>
    %54 = arith.subf %49, %53 : vector<16x128xf32>
    %cst_34 = arith.constant 1.000000e+02 : f32
    %55 = vector.broadcast %cst_34 : f32 to vector<16x128xf32>
    %56 = arith.mulf %55, %54 : vector<16x128xf32>
    %57 = math.exp %56 : vector<16x128xf32>
    %cst_35 = arith.constant dense<0.000000e+00> : vector<128xf32>
    %58 = vector.multi_reduction <add>, %57, %cst_35 [0] : vector<16x128xf32> to vector<128xf32>
    %59 = vector.shape_cast %58 : vector<128xf32> to vector<1x128xf32>
    %60 = tpu.reciprocal %59 {approx = true} : vector<1x128xf32> -> vector<1x128xf32>
    %61 = vector.broadcast %60 : vector<1x128xf32> to vector<16x128xf32>
    %62 = arith.mulf %57, %61 : vector<16x128xf32>
    %63 = vector.shape_cast %50 : vector<1x128xf32> to vector<1x1x128xf32>
    %cst_36 = arith.constant dense<0.000000e+00> : vector<1xf32>
    %64 = vector.multi_reduction <add>, %63, %cst_36 [1, 2] : vector<1x1x128xf32> to vector<1xf32>
    %65 = vector.shape_cast %64 : vector<1xf32> to vector<1x1x1xf32>
    %66 = vector.extract %65[0, 0, 0] : f32 from vector<1x1x1xf32>
    %67 = vector.broadcast %66 : f32 to vector<1x1xf32>
    %cst_37 = arith.constant 9.99999997E-7 : f32
    %68 = vector.broadcast %cst_37 : f32 to vector<1x1xf32>
    %69 = arith.addf %67, %68 : vector<1x1xf32>
    %70 = tpu.reciprocal %69 {approx = true} : vector<1x1xf32> -> vector<1x1xf32>
    %71 = vector.broadcast %50 : vector<1x128xf32> to vector<16x128xf32>
    %72 = arith.mulf %62, %71 : vector<16x128xf32>
    %cst_38 = arith.constant dense<0.000000e+00> : vector<128xf32>
    %73 = vector.multi_reduction <add>, %72, %cst_38 [0] : vector<16x128xf32> to vector<128xf32>
    %74 = vector.shape_cast %73 : vector<128xf32> to vector<1x128xf32>
    %75 = vector.broadcast %70 : vector<1x1xf32> to vector<1x128xf32>
    %76 = arith.mulf %74, %75 : vector<1x128xf32>
    %cst_39 = arith.constant 9.99999993E-9 : f32
    %77 = vector.broadcast %cst_39 : f32 to vector<1x128xf32>
    %78 = arith.cmpf olt, %76, %77 : vector<1x128xf32>
    %cst_40 = arith.constant 1.000000e+00 : f32
    %79 = vector.broadcast %cst_40 : f32 to vector<1x128xf32>
    %80 = arith.select %78, %79, %76 : vector<1x128xi1>, vector<1x128xf32>
    %81 = math.log %80 : vector<1x128xf32>
    %82 = vector.shape_cast %81 : vector<1x128xf32> to vector<1x1x128xf32>
    %cst_41 = arith.constant dense<0.000000e+00> : vector<1xf32>
    %83 = vector.multi_reduction <add>, %82, %cst_41 [1, 2] : vector<1x1x128xf32> to vector<1xf32>
    %84 = vector.shape_cast %83 : vector<1xf32> to vector<1x1x1xf32>
    %85 = vector.extract %84[0, 0, 0] : f32 from vector<1x1x1xf32>
    %86 = vector.broadcast %85 : f32 to vector<1x1xf32>
    %cst_42 = arith.constant -6.250000e-02 : f32
    %87 = vector.broadcast %cst_42 : f32 to vector<1x1xf32>
    %88 = arith.mulf %87, %86 : vector<1x1xf32>
    %c0_43 = arith.constant 0 : index
    %c0_44 = arith.constant 0 : index
    %89 = vector.load %arg4[%c0_43, %c0_44] : memref<1x1xf32, #tpu.memory_space<vmem>>, vector<1x1xf32>
    tpu.vector_store %arg4[%c0_43, %c0_44], %88 {strides = array<i32>} : memref<1x1xf32, #tpu.memory_space<vmem>>, vector<1x1xf32>,
    return
  }
  func.func @transform_1(%arg0: i32, %arg1: memref<16xi32, #tpu.memory_space<smem>>) -> (i32, i32) {
    %c0_i32 = arith.constant 0 : i32
    %c0_i32_0 = arith.constant 0 : i32
    %c0_i32_1 = arith.constant 0 : i32
    return %c0_i32, %c0_i32_0 : i32, i32
  }
  func.func @transform_2(%arg0: i32, %arg1: memref<16xi32, #tpu.memory_space<smem>>) -> (i32, i32) {
    %c0_i32 = arith.constant 0 : i32
    %c0_i32_0 = arith.constant 0 : i32
    %c0_i32_1 = arith.constant 0 : i32
    return %c0_i32, %c0_i32_0 : i32, i32
  }
}

</mosaic_0001>

<llo_original>
// kernel: tpu_custom_call.1
$region0: #{tpu_custom_call.1}
  #allocation0 [shape = 'u32[]', space=smem, size = 0x4, offset = 0x4, fixed_abs, tag = 'smem constant byte address 0x4 - core index']
  #allocation1 [shape = 'u32[144,128]{1,0:T(1,128)}', space=vmem, size = 0x12000, scoped, tag = 'internal scratch']
  #allocation2 [shape = 'f32[16,128]{1,0:T(8,128)}', space=vmem, size = 0x2000, scoped, tag = 'scratch operand']
  #allocation3 [shape = 's32[8]{0}', space=sflag, size = 0x20, scoped, tag = 'scratch operand']
  #allocation4 [shape = 's32[1]{0}', space=sflag, size = 0x4, scoped, tag = 'scoped memory for tpu_custom_call.1']
  #allocation5 [shape = 'u8[512]{0}', space=smem, size = 0x200, scoped, tag = 'prefetched SMEM operand 0']
  #allocation8 [shape = 's32[]', space=sflag, size = 0x4, offset = 0, fixed_abs, tag = 'sflag constant byte address 0x0 - dummy sync flag']
  #allocation9 [shape = 's32[]', space=sflag, size = 0x4, offset = 0, fixed_abs, tag = 'sflag constant byte address 0x0 - dummy sync flag']
  #allocation10 [shape = 'u32[]', space=smem, size = 0x4, offset = 0x44, fixed_abs, tag = 'smem constant byte address 0x44 - assertion arg 0']
  #allocation11 [shape = 'u32[]', space=smem, size = 0x4, offset = 0x48, fixed_abs, tag = 'smem constant byte address 0x48 - assertion arg 1']
  #allocation12 [shape = 's32[]', space=sflag, size = 0x4, offset = 0, fixed_abs, tag = 'sflag constant byte address 0x0 - dummy sync flag']
  #allocation13 [shape = 's32[]', space=sflag, size = 0x4, offset = 0, fixed_abs, tag = 'sflag constant byte address 0x0 - dummy sync flag']
  #allocation14 [shape = 's32[]', space=sflag, size = 0x4, offset = 0, fixed_abs, tag = 'sflag constant byte address 0x0 - dummy sync flag']
  #allocation15 [shape = 's32[]', space=sflag, size = 0x4, offset = 0, fixed_abs, tag = 'sflag constant byte address 0x0 - dummy sync flag']
  #allocation16 [shape = 's32[]', space=sflag, size = 0x4, offset = 0, fixed_abs, tag = 'sflag constant byte address 0x0 - dummy sync flag']
  #allocation17 [shape = 's32[]', space=sflag, size = 0x4, offset = 0, fixed_abs, tag = 'sflag constant byte address 0x0 - dummy sync flag']
  #allocation18 [shape = 's32[]', space=sflag, size = 0x4, offset = 0, fixed_abs, tag = 'sflag constant byte address 0x0 - dummy sync flag']
  #allocation19 [shape = 's32[]', space=sflag, size = 0x4, offset = 0, fixed_abs, tag = 'sflag constant byte address 0x0 - dummy sync flag']
  #allocation20 [shape = 's32[]', space=sflag, size = 0x4, offset = 0, fixed_abs, tag = 'sflag constant byte address 0x0 - dummy sync flag']
  #allocation21 [shape = 's32[]', space=sflag, size = 0x4, offset = 0, fixed_abs, tag = 'sflag constant byte address 0x0 - dummy sync flag']
  #allocation22 [shape = 's32[]', space=sflag, size = 0x4, offset = 0, fixed_abs, tag = 'sflag constant byte address 0x0 - dummy sync flag']
  #allocation23 [shape = 's32[]', space=sflag, size = 0x4, offset = 0, fixed_abs, tag = 'sflag constant byte address 0x0 - dummy sync flag']
  #allocation24 [shape = 's32[]', space=sflag, size = 0x4, offset = 0, fixed_abs, tag = 'sflag constant byte address 0x0 - dummy sync flag']
  #allocation25 [shape = 's32[]', space=sflag, size = 0x4, offset = 0, fixed_abs, tag = 'sflag constant byte address 0x0 - dummy sync flag']
  #allocation26 [shape = 's32[]', space=sflag, size = 0x4, offset = 0, fixed_abs, tag = 'sflag constant byte address 0x0 - dummy sync flag']
  #allocation27 [shape = 's32[]', space=sflag, size = 0x4, offset = 0, fixed_abs, tag = 'sflag constant byte address 0x0 - dummy sync flag']
  %s0 = inlined_call_operand.hbm [shape: s32[16], index: 0, kind: input, shape index: {}]
  %s1 = inlined_call_operand.hbm [shape: f32[64,128], index: 1, kind: input, shape index: {}]
  %s2 = inlined_call_operand.vmem [shape: f32[1,128], index: 2, kind: input, shape index: {}]
  %s3 = inlined_call_operand.hbm [shape: f32[1,1], index: 3, kind: output, shape index: {}]
  %s4 = sld [smem:[#allocation0]]
  $region61: #{tpu_custom_call.1} parent=0
    _
  %s6 = ssub.s32 1, %s4
  %s7 = scalar_select 0, %s6, %s4
  %9 = dma.hbm_to_smem %s0, 16, [#allocation5], [#allocation4]
  %10 = dma.done [#allocation4], 16
  %11 = sfence
  $region1: #{tpu_custom_call.1} parent=0
    #allocation6 [shape = 'u8[512]{0}', space=vmem, size = 0x400, scoped, tag = 'output window, operand 0, single buffered']
    #allocation7 [shape = 's32[1]{0}', space=sflag, size = 0x4, scoped, tag = 'scoped memory for tpu_custom_call.1']
    %12 = vsyncpa [#allocation7], 0
    // Predicated region
    $region2: #{tpu_custom_call.1} parent=1 // pred_check
      _
    $region3: #{tpu_custom_call.1} parent=1 // pred_check_branch
      %14 = sbr.rel (0) target = $region5
    $region4: #{tpu_custom_call.1} parent=1 // pred_region
      _
    $region5: #{tpu_custom_call.1} parent=1 // pred_fallthru
      _
    %s15 = sld [smem:[#allocation5]]
    %s16 = smul.addr %s15, 16
    %s17 = scalar_lea.hbm %s1, %s16
    // Predicated region
    $region6: #{tpu_custom_call.1} parent=1 // pred_check
      _
    $region7: #{tpu_custom_call.1} parent=1 // pred_check_branch
      %19 = sbr.rel target = $region9
    $region8: #{tpu_custom_call.1} parent=1 // pred_region
      %20 = sst [smem:[#allocation10]] [#allocation9]
      %21 = sst [smem:[#allocation11]] [#allocation8]
    $region9: #{tpu_custom_call.1} parent=1 // pred_fallthru
      _
    %23 = shalt.err (0)
    %s25 = sshll.u32 [#allocation2], 4
    %s26 = int_to_ptr.vmem [resolvable:$true] %s25
    %28 = dma.hbm_to_vmem [thread:$0]  %s17, 16, %s26, [#allocation3]
    %s29 = sld [smem:[#allocation5 + $0x1]]
    %s30 = sadd.s32 %s29, 4
    %s31 = smul.addr %s30, 16
    %s32 = scalar_lea.hbm %s1, %s31
    %s33 = scalar_lea.vmem [#allocation2], 1
    %s34 = scalar_lea.sflag [#allocation3], 1
    // Predicated region
    $region10: #{tpu_custom_call.1} parent=1 // pred_check
      _
    $region11: #{tpu_custom_call.1} parent=1 // pred_check_branch
      %36 = sbr.rel target = $region13
    $region12: #{tpu_custom_call.1} parent=1 // pred_region
      %37 = sst [smem:[#allocation10]] [#allocation13]
      %38 = sst [smem:[#allocation11]] [#allocation12]
    $region13: #{tpu_custom_call.1} parent=1 // pred_fallthru
      _
    %40 = shalt.err (0)
    %s42 = sshll.u32 %s33, 4
    %s43 = int_to_ptr.vmem [resolvable:$true] %s42
    %45 = dma.hbm_to_vmem [thread:$0]  %s32, 16, %s43, %s34
    %s46 = sld [smem:[#allocation5 + $0x2]]
    %s47 = sadd.s32 %s46, 8
    %s48 = smul.addr %s47, 16
    %s49 = scalar_lea.hbm %s1, %s48
    %s50 = scalar_lea.vmem [#allocation2], 2
    %s51 = scalar_lea.sflag [#allocation3], 2
    // Predicated region
    $region14: #{tpu_custom_call.1} parent=1 // pred_check
      _
    $region15: #{tpu_custom_call.1} parent=1 // pred_check_branch
      %53 = sbr.rel target = $region17
    $region16: #{tpu_custom_call.1} parent=1 // pred_region
      %54 = sst [smem:[#allocation10]] [#allocation15]
      %55 = sst [smem:[#allocation11]] [#allocation14]
    $region17: #{tpu_custom_call.1} parent=1 // pred_fallthru
      _
    %57 = shalt.err (0)
    %s59 = sshll.u32 %s50, 4
    %s60 = int_to_ptr.vmem [resolvable:$true] %s59
    %62 = dma.hbm_to_vmem [thread:$0]  %s49, 16, %s60, %s51
    %s63 = sld [smem:[#allocation5 + $0x3]]
    %s64 = sadd.s32 %s63, 12
    %s65 = smul.addr %s64, 16
    %s66 = scalar_lea.hbm %s1, %s65
    %s67 = scalar_lea.vmem [#allocation2], 3
    %s68 = scalar_lea.sflag [#allocation3], 3
    // Predicated region
    $region18: #{tpu_custom_call.1} parent=1 // pred_check
      _
    $region19: #{tpu_custom_call.1} parent=1 // pred_check_branch
      %70 = sbr.rel target = $region21
    $region20: #{tpu_custom_call.1} parent=1 // pred_region
      %71 = sst [smem:[#allocation10]] [#allocation17]
      %72 = sst [smem:[#allocation11]] [#allocation16]
    $region21: #{tpu_custom_call.1} parent=1 // pred_fallthru
      _
    %74 = shalt.err (0)
    %s76 = sshll.u32 %s67, 4
    %s77 = int_to_ptr.vmem [resolvable:$true] %s76
    %79 = dma.hbm_to_vmem [thread:$0]  %s66, 16, %s77, %s68
    %s80 = sld [smem:[#allocation5 + $0x4]]
    %s81 = sadd.s32 %s80, 16
    %s82 = smul.addr %s81, 16
    %s83 = scalar_lea.hbm %s1, %s82
    %s84 = scalar_lea.vmem [#allocation2], 4
    %s85 = scalar_lea.sflag [#allocation3], 4
    // Predicated region
    $region22: #{tpu_custom_call.1} parent=1 // pred_check
      _
    $region23: #{tpu_custom_call.1} parent=1 // pred_check_branch
      %87 = sbr.rel target = $region25
    $region24: #{tpu_custom_call.1} parent=1 // pred_region
      %88 = sst [smem:[#allocation10]] [#allocation19]
      %89 = sst [smem:[#allocation11]] [#allocation18]
    $region25: #{tpu_custom_call.1} parent=1 // pred_fallthru
      _
    %91 = shalt.err (0)
    %s93 = sshll.u32 %s84, 4
    %s94 = int_to_ptr.vmem [resolvable:$true] %s93
    %96 = dma.hbm_to_vmem [thread:$0]  %s83, 16, %s94, %s85
    %s97 = sld [smem:[#allocation5 + $0x5]]
    %s98 = sadd.s32 %s97, 20
    %s99 = smul.addr %s98, 16
    %s100 = scalar_lea.hbm %s1, %s99
    %s101 = scalar_lea.vmem [#allocation2], 5
    %s102 = scalar_lea.sflag [#allocation3], 5
    // Predicated region
    $region26: #{tpu_custom_call.1} parent=1 // pred_check
      _
    $region27: #{tpu_custom_call.1} parent=1 // pred_check_branch
      %104 = sbr.rel target = $region29
    $region28: #{tpu_custom_call.1} parent=1 // pred_region
      %105 = sst [smem:[#allocation10]] [#allocation21]
      %106 = sst [smem:[#allocation11]] [#allocation20]
    $region29: #{tpu_custom_call.1} parent=1 // pred_fallthru
      _
    %108 = shalt.err (0)
    %s110 = sshll.u32 %s101, 4
    %s111 = int_to_ptr.vmem [resolvable:$true] %s110
    %113 = dma.hbm_to_vmem [thread:$0]  %s100, 16, %s111, %s102
    %s114 = sld [smem:[#allocation5 + $0x6]]
    %s115 = sadd.s32 %s114, 24
    %s116 = smul.addr %s115, 16
    %s117 = scalar_lea.hbm %s1, %s116
    %s118 = scalar_lea.vmem [#allocation2], 6
    %s119 = scalar_lea.sflag [#allocation3], 6
    // Predicated region
    $region30: #{tpu_custom_call.1} parent=1 // pred_check
      _
    $region31: #{tpu_custom_call.1} parent=1 // pred_check_branch
      %121 = sbr.rel target = $region33
    $region32: #{tpu_custom_call.1} parent=1 // pred_region
      %122 = sst [smem:[#allocation10]] [#allocation23]
      %123 = sst [smem:[#allocation11]] [#allocation22]
    $region33: #{tpu_custom_call.1} parent=1 // pred_fallthru
      _
    %125 = shalt.err (0)
    %s127 = sshll.u32 %s118, 4
    %s128 = int_to_ptr.vmem [resolvable:$true] %s127
    %130 = dma.hbm_to_vmem [thread:$0]  %s117, 16, %s128, %s119
    %s131 = sld [smem:[#allocation5 + $0x7]]
    %s132 = sadd.s32 %s131, 28
    %s133 = smul.addr %s132, 16
    %s134 = scalar_lea.hbm %s1, %s133
    %s135 = scalar_lea.vmem [#allocation2], 7
    %s136 = scalar_lea.sflag [#allocation3], 7
    // Predicated region
    $region34: #{tpu_custom_call.1} parent=1 // pred_check
      _
    $region35: #{tpu_custom_call.1} parent=1 // pred_check_branch
      %138 = sbr.rel target = $region37
    $region36: #{tpu_custom_call.1} parent=1 // pred_region
      %139 = sst [smem:[#allocation10]] [#allocation25]
      %140 = sst [smem:[#allocation11]] [#allocation24]
    $region37: #{tpu_custom_call.1} parent=1 // pred_fallthru
      _
    %142 = shalt.err (0)
    %s144 = sshll.u32 %s135, 4
    %s145 = int_to_ptr.vmem [resolvable:$true] %s144
    %147 = dma.hbm_to_vmem [thread:$0]  %s134, 16, %s145, %s136
    loop: start=0, step=1, limit=16
    $region38: #{tpu_custom_call.1} parent=1 // loop_pre_header
      _
    $region39: #{tpu_custom_call.1} parent=1 // loop_header
      %s149 = sphi 0, %s153
      %p150 = scmp.ge.s32.totalorder %s149, 16
    $region40: #{tpu_custom_call.1} parent=1 // loop_header_branch
      %152 = sbr.rel (%p150) target = $region44
    $region41: #{tpu_custom_call.1} parent=1 // loop_body
      %s154 = sld [smem:[#allocation5 + %s149]]
      %p155 = scmp.lt.s32.totalorder %s149, 0
      %s156 = ssub.s32 0, %s149
      %s157 = scalar_select %p155, %s156, %s149
      %s158 = sand.u32 %s157, 7
      %s159 = ssub.s32 0, %s158
      %s160 = scalar_select %p155, %s159, %s158
      %p161 = scmp.ne.s32.totalorder %s160, 0
      %p162 = scmp.lt.s32.totalorder %s160, 0
      %p163 = pnand %p162, %p161
      %p164 = pneg %p163
      %s165 = sadd.s32 %s160, 8
      %s166 = scalar_select %p164, %s165, %s160
      %s167 = scalar_lea.sflag [#allocation3], %s166
      %s168 = smul.u32 1, 1
      %s169 = sshll.u32 %s168, 4
      %170 = dma.done %s167, %s169
      %s171 = sadd.s32 %s149, 8
      %p172 = scmp.lt.s32.totalorder %s171, 16
      // Predicated region
      $region45: #{tpu_custom_call.1} parent=41 // pred_check
        %p173 = pneg %p172
      $region46: #{tpu_custom_call.1} parent=41 // pred_check_branch
        %175 = sbr.rel (%p173) target = $region48
      $region47: #{tpu_custom_call.1} parent=41 // pred_region
        %s176 = smul.u32 %s171, 4
        %s177 = sld [smem:[#allocation5 + %s171]]
        %s178 = sadd.s32 %s176, %s177
        %p179 = scmp.lt.s32.totalorder %s171, 0
        %s180 = ssub.s32 0, %s171
        %s181 = scalar_select %p179, %s180, %s171
        %s182 = sand.u32 %s181, 7
        %s183 = ssub.s32 0, %s182
        %s184 = scalar_select %p179, %s183, %s182
        %p185 = scmp.ne.s32.totalorder %s184, 0
        %p186 = scmp.lt.s32.totalorder %s184, 0
        %p187 = pnand %p186, %p185
        %p188 = pneg %p187
        %s189 = sadd.s32 %s184, 8
        %s190 = scalar_select %p188, %s189, %s184
        %s191 = smul.addr %s178, 16
        %s192 = scalar_lea.hbm %s1, %s191
        %s193 = scalar_lea.vmem [#allocation2], %s171
        %s194 = scalar_lea.sflag [#allocation3], %s190
        // Predicated region
        $region49: #{tpu_custom_call.1} parent=47 // pred_check
          _
        $region50: #{tpu_custom_call.1} parent=47 // pred_check_branch
          %196 = sbr.rel target = $region52
        $region51: #{tpu_custom_call.1} parent=47 // pred_region
          %197 = sst [smem:[#allocation10]] [#allocation27]
          %198 = sst [smem:[#allocation11]] [#allocation26]
        $region52: #{tpu_custom_call.1} parent=47 // pred_fallthru
          _
        %200 = shalt.err (0)
        %s202 = sshll.u32 %s193, 4
        %s203 = int_to_ptr.vmem [resolvable:$true] %s202
        %205 = dma.hbm_to_vmem [thread:$0]  %s192, 16, %s203, %s194
      $region48: #{tpu_custom_call.1} parent=41 // pred_fallthru
        _
    $region42: #{tpu_custom_call.1} parent=1 // loop_footer
      %s153 = sadd.s32 1, %s149
    $region43: #{tpu_custom_call.1} parent=1 // loop_footer_branch
      %148 = sbr.rel target = $region39
    $region44: #{tpu_custom_call.1} parent=1 // loop_exit
      _
    %v206 = vld [vmem:[#allocation2] sm:$0xff]
    %v207 = vld [vmem:[#allocation2 + $0x8] sm:$0xff]
    %v208 = vld [vmem:[%s2] sm:$0x1]
    %v209 = vmax.f32 %v206, %v207
    %v210 = vrot.slane %v209, 4
    %v211 = vmax.f32 %v209, %v210
    %v212 = vrot.slane %v211, 2
    %v213 = vmax.f32 %v211, %v212
    %v214 = vrot.slane %v213, 1
    %v215 = vmax.f32 %v213, %v214
    %v216 = vsub.f32 %v206, %v215
    %v217 = vsub.f32 %v207, %v215
    %v218 = vmul.f32 %v216, 100.0
    %v219 = vmul.f32 %v217, 100.0
    %v220 = vmul.f32 %v218, 1.442695
    %v221 = vpow.pop %v220
    %v222 = vmul.f32 %v219, 1.442695
    %v223 = vpow.pop %v222
    %v224 = vadd.f32 %v221, %v223
    %v225 = vrot.slane %v224, 4
    %v226 = vadd.f32 %v224, %v225
    %v227 = vrot.slane %v226, 2
    %v228 = vadd.f32 %v226, %v227
    %v229 = vrot.slane %v228, 1
    %v230 = vadd.f32 %v228, %v229
    %v231 = vrcp.pop %v230
    %v232 = vmul.f32 %v221, %v231
    %v233 = vmul.f32 %v223, %v231
    %vm234 = vcmask 1040384
    %v235 = vsel %vm234, %v208, 0.0
    %236 = vadd.xlane.f32.xlu0 %v235
    %v237 = vpop.xlane.xlu0 %236
    %v238 = vrot.slane %v237, 4
    %v239 = vadd.f32 %v237, %v238
    %v240 = vrot.slane %v239, 2
    %v241 = vadd.f32 %v239, %v240
    %v242 = vrot.slane %v241, 1
    %v243 = vadd.f32 %v241, %v242
    %s244 = vtos %v243
    %v245 = vstv %s244
    %v246 = vadd.f32 %v245, 1e-06
    %v247 = vrcp.pop %v246
    %v249 = vlaneseq
    %v250 = vshrl.u32 %v249, 7
    %v251 = vsub.s32 0, %v250
    %v252 = vrot.slane %v208, %v251
    %v254 = vmul.f32 %v232, %v252
    %v255 = vmul.f32 %v233, %v252
    %v256 = vadd.f32 %v254, %v255
    %v257 = vrot.slane %v256, 4
    %v258 = vadd.f32 %v256, %v257
    %v259 = vrot.slane %v258, 2
    %v260 = vadd.f32 %v258, %v259
    %v261 = vrot.slane %v260, 1
    %v262 = vadd.f32 %v260, %v261
    %v263 = vmul.f32 %v262, %v247
    %vm264 = vcmp.lt.f32.partialorder %v263, 1e-08
    %v265 = vsel %vm264, 1.0, %v263
    %v266 = vlog2.pop %v265
    %v267 = vmul.f32 %v266, 0.6931472
    %v268 = vsel %vm234, %v267, 0.0
    %269 = vadd.xlane.f32.xlu0 %v268
    %v270 = vpop.xlane.xlu0 %269
    %v271 = vrot.slane %v270, 4
    %v272 = vadd.f32 %v270, %v271
    %v273 = vrot.slane %v272, 2
    %v274 = vadd.f32 %v272, %v273
    %v275 = vrot.slane %v274, 1
    %v276 = vadd.f32 %v274, %v275
    %s277 = vtos %v276
    %v278 = vstv %s277
    %v279 = vmul.f32 %v278, -0.0625
    %vm280 = vcmask 0
    %281 = vst.msk [vmem:[#allocation6] sm:$0x1] %vm280, %v279
    // Predicated region
    $region53: #{tpu_custom_call.1} parent=1 // pred_check
      _
    $region54: #{tpu_custom_call.1} parent=1 // pred_check_branch
      %283 = sbr.rel (0) target = $region56
    $region55: #{tpu_custom_call.1} parent=1 // pred_region
      %s285 = ssub.s32 16, 16
      %286 = vsyncadd [#allocation7], %s285
      %s288 = sshll.u32 [#allocation6], 4
      %s289 = int_to_ptr.vmem [resolvable:$true] %s288
      %291 = dma.vmem_to_hbm [thread:$0]  %s289, 16, %s3, [#allocation7]
    $region56: #{tpu_custom_call.1} parent=1 // pred_fallthru
      _
    // Predicated region
    $region57: #{tpu_custom_call.1} parent=1 // pred_check
      _
    $region58: #{tpu_custom_call.1} parent=1 // pred_check_branch
      %293 = sbr.rel (0) target = $region60
    $region59: #{tpu_custom_call.1} parent=1 // pred_region
      %294 = dma.done [#allocation7], 16
    $region60: #{tpu_custom_call.1} parent=1 // pred_fallthru
      _
    %295 = vsyncpa [#allocation7], 1
  %296 = vsyncmov [#allocation3]
  %s297 = vpop.sfrf %296
  %p298 = scmp.eq.s32.totalorder %s297, 0
  %p299 = pneg %p298
  %301 = shalt.err (%p299)
  %s302 = scalar_lea.sflag [#allocation3], 1
  %303 = vsyncmov %s302
  %s304 = vpop.sfrf %303
  %p305 = scmp.eq.s32.totalorder %s304, 0
  %p306 = pneg %p305
  %308 = shalt.err (%p306)
  %s309 = scalar_lea.sflag [#allocation3], 2
  %310 = vsyncmov %s309
  %s311 = vpop.sfrf %310
  %p312 = scmp.eq.s32.totalorder %s311, 0
  %p313 = pneg %p312
  %315 = shalt.err (%p313)
  %s316 = scalar_lea.sflag [#allocation3], 3
  %317 = vsyncmov %s316
  %s318 = vpop.sfrf %317
  %p319 = scmp.eq.s32.totalorder %s318, 0
  %p320 = pneg %p319
  %322 = shalt.err (%p320)
  %s323 = scalar_lea.sflag [#allocation3], 4
  %324 = vsyncmov %s323
  %s325 = vpop.sfrf %324
  %p326 = scmp.eq.s32.totalorder %s325, 0
  %p327 = pneg %p326
  %329 = shalt.err (%p327)
  %s330 = scalar_lea.sflag [#allocation3], 5
  %331 = vsyncmov %s330
  %s332 = vpop.sfrf %331
  %p333 = scmp.eq.s32.totalorder %s332, 0
  %p334 = pneg %p333
  %336 = shalt.err (%p334)
  %s337 = scalar_lea.sflag [#allocation3], 6
  %338 = vsyncmov %s337
  %s339 = vpop.sfrf %338
  %p340 = scmp.eq.s32.totalorder %s339, 0
  %p341 = pneg %p340
  %343 = shalt.err (%p341)
  %s344 = scalar_lea.sflag [#allocation3], 7
  %345 = vsyncmov %s344
  %s346 = vpop.sfrf %345
  %p347 = scmp.eq.s32.totalorder %s346, 0
  %p348 = pneg %p347
  %350 = shalt.err (%p348)

</llo_original>
